<compile_context>
chip_gen: v7x
topology: tpu7x:2x2x1
jax: 0.10.0
libtpu: 0.0.40
codegen_flags: <defaults>
</compile_context>

<pallas_src>
import functools

import jax
import jax.numpy as jnp
from jax.experimental import pallas as pl
from jax.experimental.pallas import tpu as pltpu

_VMEM_LIMIT = 32 * 1024 * 1024          # explicit scoped-VMEM budget (safe on v5e/v6e/v7x)
_BN_EPS = 1e-5


# ---------------------------------------------------------------------------
# small helpers
# ---------------------------------------------------------------------------

def _round_up(x, m):
    return ((x + m - 1) // m) * m


def _pad_k(k):
    """Padded reduction size (used consistently for activations and weights)."""
    if k % 128 == 0:
        return k
    if k <= 128:
        return _round_up(k, 8)
    return _round_up(k, 128)


def _pick_k_tile(kp):
    if kp <= 2048:
        return kp
    for cand in range(2048, 0, -128):
        if kp % cand == 0:
            return cand
    return 128


def _pick_n_tile(n):
    if n <= 256:
        return n
    if n % 256 == 0:
        return 256
    if n % 128 == 0:
        return 128
    return n


def _compiler_params(dims):
    return pltpu.CompilerParams(dimension_semantics=dims,
                                vmem_limit_bytes=_VMEM_LIMIT)


# ---------------------------------------------------------------------------
# tiled MXU matmul (bf16 operands, f32 accumulation)
# ---------------------------------------------------------------------------

def _matmul_kernel(a_ref, b_ref, o_ref, acc_ref):
    @pl.when(pl.program_id(2) == 0)
    def _():
        acc_ref[...] = jnp.zeros_like(acc_ref)

    acc_ref[...] += jnp.dot(a_ref[...], b_ref[...],
                            preferred_element_type=jnp.float32)

    @pl.when(pl.program_id(2) == pl.num_programs(2) - 1)
    def _():
        o_ref[...] = acc_ref[...].astype(o_ref.dtype)


def pallas_matmul(a, b, out_dtype=jnp.bfloat16):
    """a: [M, K], b: [K or Kp, N] -> [M, N]; bf16 MXU with f32 accumulator."""
    m, k = a.shape
    n = b.shape[1]
    kp = _pad_k(k)
    tm = 256 if m >= 256 else _round_up(m, 8)
    tn = _pick_n_tile(n)
    tk = _pick_k_tile(kp)
    mp = _round_up(m, tm)

    a = a.astype(jnp.bfloat16)
    b = b.astype(jnp.bfloat16)
    if (mp, kp) != (m, k):
        a = jnp.pad(a, ((0, mp - m), (0, kp - k)))      # zero pad keeps acc exact
    if b.shape[0] != kp:                                # weights are pre-padded already
        b = jnp.pad(b, ((0, kp - b.shape[0]), (0, 0)))

    out = pl.pallas_call(
        _matmul_kernel,
        out_shape=jax.ShapeDtypeStruct((mp, n), out_dtype),
        grid_spec=pltpu.PrefetchScalarGridSpec(
            num_scalar_prefetch=0,
            grid=(mp // tm, n // tn, kp // tk),
            in_specs=[
                pl.BlockSpec((tm, tk), lambda i, j, kk: (i, kk)),
                pl.BlockSpec((tk, tn), lambda i, j, kk: (kk, j)),
            ],
            out_specs=pl.BlockSpec((tm, tn), lambda i, j, kk: (i, j)),
            scratch_shapes=[pltpu.VMEM((tm, tn), jnp.float32)],
        ),
        compiler_params=_compiler_params(("parallel", "parallel", "arbitrary")),
        cost_estimate=pl.CostEstimate(
            flops=2 * m * n * k,
            transcendentals=0,
            bytes_accessed=2 * (mp * kp + kp * n + mp * n)),
    )(a, b)
    return out[:m] if mp != m else out


# ---------------------------------------------------------------------------
# convolutions
# ---------------------------------------------------------------------------

def _prep_conv(w_oihw):
    """One-time weight preprocessing: layout transpose, bf16 cast, K pre-pad."""
    cout, cin, kh, kw = w_oihw.shape
    w4 = jnp.transpose(w_oihw, (2, 3, 1, 0)).astype(jnp.bfloat16)   # (kh,kw,cin,cout)
    k = kh * kw * cin
    kp = _pad_k(k)
    wmat = w4.reshape(k, cout)
    if kp != k:
        wmat = jnp.pad(wmat, ((0, kp - k), (0, 0)))
    return {"w4": w4, "wmat": wmat}


def _conv_im2col(x, cw, stride, pad):
    """Fallback conv path: im2col (JAX glue) + Pallas matmul. x: NHWC bf16."""
    n, h, w, cin = x.shape
    kh, kw, _, cout = cw["w4"].shape
    ho = (h + 2 * pad - kh) // stride + 1
    wo = (w + 2 * pad - kw) // stride + 1

    if kh == 1 and kw == 1 and pad == 0:
        xs = x[:, ::stride, ::stride, :]
        patches = xs.reshape(n * ho * wo, cin)
    else:
        xp = jnp.pad(x, ((0, 0), (pad, pad), (pad, pad), (0, 0)))
        cols = []
        for ki in range(kh):
            for kj in range(kw):
                cols.append(xp[:, ki:ki + stride * (ho - 1) + 1:stride,
                               kj:kj + stride * (wo - 1) + 1:stride, :])
        patches = jnp.concatenate(cols, axis=-1).reshape(n * ho * wo, kh * kw * cin)

    out = pallas_matmul(patches, cw["wmat"])
    return out.reshape(n, ho, wo, cout)


def _conv3x3_s1_kernel(x0_ref, x1_ref, x2_ref, w_ref, o_ref):
    """Stride-1 3x3 conv: 9-tap accumulation entirely in VMEM (no im2col in HBM)."""
    th, w_out, tn = o_ref.shape[1], o_ref.shape[2], o_ref.shape[3]
    cin = w_ref.shape[2]
    acc = jnp.zeros((th * w_out, tn), jnp.float32)
    for ki, xr in enumerate((x0_ref, x1_ref, x2_ref)):
        row = xr[0].astype(jnp.float32)                        # (th, Wp, Cin)
        for kj in range(3):
            a = row[:, kj:kj + w_out, :].reshape(th * w_out, cin)
            acc += jnp.dot(a.astype(jnp.bfloat16), w_ref[ki, kj],
                           preferred_element_type=jnp.float32)
    o_ref[...] = acc.reshape(1, th, w_out, tn).astype(o_ref.dtype)


def _conv3x3_s1(x, w4):
    """Fused 3x3 stride-1 pad-1 conv. x: (N,H,W,Cin) bf16, w4: (3,3,Cin,Cout) bf16."""
    n, h, w, cin = x.shape
    cout = w4.shape[3]
    wp = w + 2
    xp = jnp.pad(x, ((0, 0), (1, 1), (1, 1), (0, 0)))
    th = h if h <= 8 else 8
    hpad = _round_up(h, th)
    shifts = []
    for ki in range(3):
        s = xp[:, ki:ki + h, :, :]
        if hpad > h:
            s = jnp.pad(s, ((0, 0), (0, hpad - h), (0, 0), (0, 0)))
        shifts.append(s)
    tn = _pick_n_tile(cout)

    row_spec = pl.BlockSpec((1, th, wp, cin), lambda c, nn, t: (nn, t, 0, 0))
    out = pl.pallas_call(
        _conv3x3_s1_kernel,
        out_shape=jax.ShapeDtypeStruct((n, hpad, w, cout), jnp.bfloat16),
        grid_spec=pltpu.PrefetchScalarGridSpec(
            num_scalar_prefetch=0,
            grid=(cout // tn, n, hpad // th),
            in_specs=[row_spec, row_spec, row_spec,
                      pl.BlockSpec((3, 3, cin, tn), lambda c, nn, t: (0, 0, 0, c))],
            out_specs=pl.BlockSpec((1, th, w, tn), lambda c, nn, t: (nn, t, 0, c)),
        ),
        compiler_params=_compiler_params(("parallel", "parallel", "arbitrary")),
        cost_estimate=pl.CostEstimate(
            flops=2 * n * hpad * w * 9 * cin * cout,
            transcendentals=0,
            bytes_accessed=2 * (3 * n * hpad * wp * cin + 9 * cin * cout
                                + n * hpad * w * cout)),
    )(shifts[0], shifts[1], shifts[2], w4)
    return out[:, :h] if hpad > h else out


_FUSED3_STATE = {"checked": False, "ok": False}


def _validate_fused3():
    """Check the fused 3x3 path against the im2col path once; disable if off."""
    k1, k2 = jax.random.split(jax.random.PRNGKey(17))
    x = (jax.random.normal(k1, (1, 8, 16, 64), jnp.float32) * 0.5).astype(jnp.bfloat16)
    w = jax.random.normal(k2, (64, 64, 3, 3), jnp.float32) * 0.05
    cw = _prep_conv(w)
    got = _conv3x3_s1(x, cw["w4"]).astype(jnp.float32)
    ref = _conv_im2col(x, cw, stride=1, pad=1).astype(jnp.float32)
    return bool(jnp.allclose(got, ref, rtol=3e-2, atol=3e-2))


def _fused3_available():
    st = _FUSED3_STATE
    if not st["checked"]:
        try:
            st["ok"] = _validate_fused3()
        except Exception:
            st["ok"] = False
        st["checked"] = True
    return st["ok"]


def conv2d(x, cw, stride, pad):
    """Conv2d (no bias). x: NHWC bf16, cw: preprocessed weights."""
    kh = cw["w4"].shape[0]
    if (kh == 3 and stride == 1 and pad == 1 and x.shape[2] % 8 == 0
            and _fused3_available()):
        try:
            return _conv3x3_s1(x, cw["w4"])
        except Exception:
            _FUSED3_STATE["ok"] = False
    return _conv_im2col(x, cw, stride, pad)


# ---------------------------------------------------------------------------
# BatchNorm (training mode): tiled two-pass (stats accumulate, then normalize)
# ---------------------------------------------------------------------------

def _bn_stats_kernel(x_ref, sum_ref, ssq_ref):
    @pl.when(pl.program_id(0) == 0)
    def _():
        sum_ref[...] = jnp.zeros_like(sum_ref)
        ssq_ref[...] = jnp.zeros_like(ssq_ref)
    x = x_ref[...].astype(jnp.float32)
    sum_ref[...] += jnp.sum(x, axis=0, keepdims=True)
    ssq_ref[...] += jnp.sum(x * x, axis=0, keepdims=True)


def _bn_apply_kernel(x_ref, scale_ref, shift_ref, o_ref, *, relu):
    y = x_ref[...].astype(jnp.float32) * scale_ref[...] + shift_ref[...]
    if relu:
        y = jnp.maximum(y, 0.0)
    o_ref[...] = y.astype(o_ref.dtype)


def _bn_apply_add_relu_kernel(x_ref, scale_ref, shift_ref, r_ref, o_ref):
    y = (x_ref[...].astype(jnp.float32) * scale_ref[...] + shift_ref[...]
         + r_ref[...].astype(jnp.float32))
    o_ref[...] = jnp.maximum(y, 0.0).astype(o_ref.dtype)


_BN_APPLY_RELU = functools.partial(_bn_apply_kernel, relu=True)
_BN_APPLY_LINEAR = functools.partial(_bn_apply_kernel, relu=False)


def _row_tile(m):
    return _round_up(m, 8) if m <= 256 else 256


def _pad_rows(x2, mp):
    m = x2.shape[0]
    return x2 if mp == m else jnp.pad(x2, ((0, mp - m), (0, 0)))


def _batch_stats(x2, m_true):
    m, c = x2.shape
    tr = _row_tile(m)
    mp = _round_up(m, tr)
    xpad = _pad_rows(x2, mp)
    s, ss = pl.pallas_call(
        _bn_stats_kernel,
        out_shape=[jax.ShapeDtypeStruct((1, c), jnp.float32),
                   jax.ShapeDtypeStruct((1, c), jnp.float32)],
        grid_spec=pltpu.PrefetchScalarGridSpec(
            num_scalar_prefetch=0,
            grid=(mp // tr,),
            in_specs=[pl.BlockSpec((tr, c), lambda i: (i, 0))],
            out_specs=[pl.BlockSpec((1, c), lambda i: (0, 0)),
                       pl.BlockSpec((1, c), lambda i: (0, 0))],
        ),
        compiler_params=_compiler_params(("arbitrary",)),
    )(xpad)
    mean = s / m_true
    var = jnp.maximum(ss / m_true - mean * mean, 0.0)   # biased variance
    return mean, var


def bn_act(x_nhwc, gamma, beta, relu, residual=None):
    """Training-mode BatchNorm (+ optional residual add) (+ optional ReLU)."""
    n, h, w, c = x_nhwc.shape
    m = n * h * w
    x2 = x_nhwc.reshape(m, c)
    mean, var = _batch_stats(x2, m)
    scale = gamma.reshape(1, c).astype(jnp.float32) * jax.lax.rsqrt(var + _BN_EPS)
    shift = beta.reshape(1, c).astype(jnp.float32) - mean * scale

    tr = _row_tile(m)
    mp = _round_up(m, tr)
    xpad = _pad_rows(x2, mp)
    row_spec = pl.BlockSpec((tr, c), lambda i: (i, 0))
    vec_spec = pl.BlockSpec((1, c), lambda i: (0, 0))

    if residual is None:
        kern = _BN_APPLY_RELU if relu else _BN_APPLY_LINEAR
        args = (xpad, scale, shift)
        in_specs = [row_spec, vec_spec, vec_spec]
    else:
        kern = _bn_apply_add_relu_kernel
        rpad = _pad_rows(residual.reshape(m, c), mp)
        args = (xpad, scale, shift, rpad)
        in_specs = [row_spec, vec_spec, vec_spec, row_spec]

    out = pl.pallas_call(
        kern,
        out_shape=jax.ShapeDtypeStruct((mp, c), jnp.bfloat16),
        grid_spec=pltpu.PrefetchScalarGridSpec(
            num_scalar_prefetch=0,
            grid=(mp // tr,),
            in_specs=in_specs,
            out_specs=row_spec,
        ),
        compiler_params=_compiler_params(("parallel",)),
    )(*args)
    return out[:m].reshape(n, h, w, c)


# ---------------------------------------------------------------------------
# MaxPool 3x3 / stride 2 / pad 1 (tiled, window max in VMEM)
# ---------------------------------------------------------------------------

def _maxpool_kernel(x0_ref, x1_ref, x2_ref, o_ref, row_ref):
    n, _, wp, c = x0_ref.shape
    wo = o_ref.shape[2]
    r = jnp.maximum(jnp.maximum(x0_ref[...], x1_ref[...]), x2_ref[...])
    row_ref[...] = r.astype(jnp.float32).reshape(n, wp, c)
    e0 = row_ref[:, pl.ds(0, wo, stride=2), :]
    e1 = row_ref[:, pl.ds(1, wo, stride=2), :]
    e2 = row_ref[:, pl.ds(2, wo, stride=2), :]
    y = jnp.maximum(jnp.maximum(e0, e1), e2)
    o_ref[...] = y.reshape(n, 1, wo, c).astype(o_ref.dtype)


def _maxpool_pallas(x):
    n, h, w, c = x.shape
    ho = (h + 2 - 3) // 2 + 1
    wo = (w + 2 - 3) // 2 + 1
    hp, wp = h + 2, w + 2
    xp = jnp.pad(x, ((0, 0), (1, 1), (1, 1), (0, 0)), constant_values=-jnp.inf)
    row_spec = lambda d: pl.BlockSpec((n, 1, wp, c), lambda o: (0, 2 * o + d, 0, 0))
    return pl.pallas_call(
        _maxpool_kernel,
        out_shape=jax.ShapeDtypeStruct((n, ho, wo, c), x.dtype),
        grid_spec=pltpu.PrefetchScalarGridSpec(
            num_scalar_prefetch=0,
            grid=(ho,),
            in_specs=[row_spec(0), row_spec(1), row_spec(2)],
            out_specs=pl.BlockSpec((n, 1, wo, c), lambda o: (0, o, 0, 0)),
            scratch_shapes=[pltpu.VMEM((n, wp, c), jnp.float32)],
        ),
        compiler_params=_compiler_params(("parallel",)),
    )(xp, xp, xp)


def _maxpool_jnp(x):
    # TODO(synk): fallback only (plain XLA); used if the strided Pallas path is unavailable.
    n, h, w, c = x.shape
    ho = (h + 2 - 3) // 2 + 1
    wo = (w + 2 - 3) // 2 + 1
    xp = jnp.pad(x, ((0, 0), (1, 1), (1, 1), (0, 0)), constant_values=-jnp.inf)
    out = None
    for ki in range(3):
        for kj in range(3):
            v = xp[:, ki:ki + 2 * (ho - 1) + 1:2, kj:kj + 2 * (wo - 1) + 1:2, :]
            out = v if out is None else jnp.maximum(out, v)
    return out


_MAXPOOL_STATE = {"checked": False, "ok": False}


def _maxpool_available():
    st = _MAXPOOL_STATE
    if not st["checked"]:
        try:
            xt = jax.random.normal(jax.random.PRNGKey(123), (1, 8, 8, 128),
                                   jnp.float32).astype(jnp.bfloat16)
            st["ok"] = bool(jnp.all(_maxpool_pallas(xt) == _maxpool_jnp(xt)))
        except Exception:
            st["ok"] = False
        st["checked"] = True
    return st["ok"]


def maxpool_3x3_s2_p1(x):
    if _maxpool_available():
        try:
            return _maxpool_pallas(x)
        except Exception:
            _MAXPOOL_STATE["ok"] = False
    return _maxpool_jnp(x)


# ---------------------------------------------------------------------------
# Deterministic parameter construction (ResNet-101 topology, PyTorch shapes)
# ---------------------------------------------------------------------------

def _init_conv(key, cout, cin, k):
    # kaiming_normal_(fan_out, relu) like torchvision's resnet init.
    std = (2.0 / (cout * k * k)) ** 0.5
    return jax.random.normal(key, (cout, cin, k, k), dtype=jnp.float32) * std


def _init_bn(c):
    return {"gamma": jnp.ones((c,), jnp.float32),
            "beta": jnp.zeros((c,), jnp.float32)}


def init_resnet101_params(key):
    params = {}
    key, k_stem = jax.random.split(key)
    params["stem_conv"] = _init_conv(k_stem, 64, 3, 7)       # conv1: 7x7/2, 3->64
    params["stem_bn"] = _init_bn(64)

    layer_cfg = [(64, 3, 1), (128, 4, 2), (256, 23, 2), (512, 3, 2)]  # ResNet-101
    inplanes = 64
    stages = []
    for planes, blocks, stride in layer_cfg:
        block_params = []
        for bi in range(blocks):
            key, k1, k2, k3, kd = jax.random.split(key, 5)
            s = stride if bi == 0 else 1
            bp = {
                "stride": s,
                "conv1": _init_conv(k1, planes, inplanes, 1),
                "bn1": _init_bn(planes),
                "conv2": _init_conv(k2, planes, planes, 3),
                "bn2": _init_bn(planes),
                "conv3": _init_conv(k3, planes * 4, planes, 1),
                "bn3": _init_bn(planes * 4),
            }
            if bi == 0:
                bp["ds_conv"] = _init_conv(kd, planes * 4, inplanes, 1)
                bp["ds_bn"] = _init_bn(planes * 4)
            block_params.append(bp)
            inplanes = planes * 4
        stages.append(block_params)
    params["stages"] = stages
    return params


def preprocess_params(raw):
    """One-time weight layout/bf16/padding preprocessing (hoisted out of forward)."""
    params = {"stem_conv": _prep_conv(raw["stem_conv"]),
              "stem_bn": raw["stem_bn"],
              "stages": []}
    for stage in raw["stages"]:
        blocks = []
        for bp in stage:
            nb = {"stride": bp["stride"],
                  "conv1": _prep_conv(bp["conv1"]), "bn1": bp["bn1"],
                  "conv2": _prep_conv(bp["conv2"]), "bn2": bp["bn2"],
                  "conv3": _prep_conv(bp["conv3"]), "bn3": bp["bn3"]}
            if "ds_conv" in bp:
                nb["ds_conv"] = _prep_conv(bp["ds_conv"])
                nb["ds_bn"] = bp["ds_bn"]
            blocks.append(nb)
        params["stages"].append(blocks)
    return params


# ---------------------------------------------------------------------------
# Forward pass (torchvision Bottleneck / ResNet-101 stage structure)
# ---------------------------------------------------------------------------

def bottleneck_forward(x, bp):
    s = bp["stride"]
    out = conv2d(x, bp["conv1"], stride=1, pad=0)
    out = bn_act(out, bp["bn1"]["gamma"], bp["bn1"]["beta"], relu=True)
    out = conv2d(out, bp["conv2"], stride=s, pad=1)
    out = bn_act(out, bp["bn2"]["gamma"], bp["bn2"]["beta"], relu=True)
    out = conv2d(out, bp["conv3"], stride=1, pad=0)
    if "ds_conv" in bp:
        identity = conv2d(x, bp["ds_conv"], stride=s, pad=0)
        identity = bn_act(identity, bp["ds_bn"]["gamma"], bp["ds_bn"]["beta"],
                          relu=False)
    else:
        identity = x
    return bn_act(out, bp["bn3"]["gamma"], bp["bn3"]["beta"], relu=True,
                  residual=identity)


def resnet101_backbone_forward(x_nchw, params):
    """Returns [c2, c3, c4, c5], each NCHW f32 like the PyTorch module."""
    x = jnp.transpose(x_nchw, (0, 2, 3, 1)).astype(jnp.bfloat16)   # NCHW -> NHWC

    # stage1: conv7x7/2 + BN + ReLU + maxpool3x3/2
    x = conv2d(x, params["stem_conv"], stride=2, pad=3)
    x = bn_act(x, params["stem_bn"]["gamma"], params["stem_bn"]["beta"], relu=True)
    x = maxpool_3x3_s2_p1(x)

    feats = []
    for stage in params["stages"]:        # stage2 .. stage5
        for bp in stage:
            x = bottleneck_forward(x, bp)
        feats.append(jnp.transpose(x, (0, 3, 1, 2)).astype(jnp.float32))
    return feats


# ---------------------------------------------------------------------------

if __name__ == "__main__":
    key = jax.random.PRNGKey(0)
    pkey, xkey = jax.random.split(key)

    raw_params = init_resnet101_params(pkey)
    params = preprocess_params(raw_params)

    # Small but valid input: 3-channel image, 64x64 so c5 is still 2x2 spatially.
    x = jax.random.normal(xkey, (2, 3, 64, 64), dtype=jnp.float32)

    feats = resnet101_backbone_forward(x, params)
    for f in feats:
        jax.block_until_ready(f)

    assert feats[0].shape == (2, 256, 16, 16)
    assert feats[1].shape == (2, 512, 8, 8)
    assert feats[2].shape == (2, 1024, 4, 4)
    assert feats[3].shape == (2, 2048, 2, 2)

    print("KERNEL_OK")
</pallas_src>

<mosaic_0001>
module attributes {stable_mosaic.version = 11 : i64} {
  func.func @_matmul_kernel(%arg0: i32, %arg1: i32, %arg2: i32, %arg3: memref<256x256xbf16, #tpu.memory_space<vmem>>, %arg4: memref<256x64xbf16, #tpu.memory_space<vmem>>, %arg5: memref<256x64xbf16, #tpu.memory_space<vmem>>, %arg6: memref<256x64xf32, #tpu.memory_space<vmem>>) attributes {dimension_semantics = [#tpu.dimension_semantics<parallel>, #tpu.dimension_semantics<parallel>, #tpu.dimension_semantics<arbitrary>], iteration_bounds = array<i64: 8, 1, 1>, scalar_prefetch = 0 : i64, scratch_operands = 1 : i64, tpu.core_type = #tpu.core_type<tc>, window_params = [{transform_indices = @transform_0, window_bounds = array<i64: 256, 256>}, {transform_indices = @transform_1, window_bounds = array<i64: 256, 64>}, {transform_indices = @transform_2, window_bounds = array<i64: 256, 64>}]} {
    %c0_i32 = arith.constant 0 : i32
    %0 = arith.cmpi eq, %arg2, %c0_i32 : i32
    %1 = arith.extui %0 : i1 to i32
    %c0_i32_0 = arith.constant 0 : i32
    %2 = arith.cmpi ne, %1, %c0_i32_0 : i32
    scf.if %2 {
      %cst_10 = arith.constant 0.000000e+00 : f32
      %12 = vector.broadcast %cst_10 : f32 to vector<256x64xf32>
      %c0_11 = arith.constant 0 : index
      %c0_12 = arith.constant 0 : index
      %13 = vector.load %arg6[%c0_11, %c0_12] : memref<256x64xf32, #tpu.memory_space<vmem>>, vector<256x64xf32>
      tpu.vector_store %arg6[%c0_11, %c0_12], %12 {strides = array<i32>} : memref<256x64xf32, #tpu.memory_space<vmem>>, vector<256x64xf32>,
    } else {
    }
    %c0 = arith.constant 0 : index
    %c0_1 = arith.constant 0 : index
    %3 = vector.load %arg6[%c0, %c0_1] : memref<256x64xf32, #tpu.memory_space<vmem>>, vector<256x64xf32>
    %c0_2 = arith.constant 0 : index
    %c0_3 = arith.constant 0 : index
    %4 = vector.load %arg3[%c0_2, %c0_3] : memref<256x256xbf16, #tpu.memory_space<vmem>>, vector<256x256xbf16>
    %c0_4 = arith.constant 0 : index
    %c0_5 = arith.constant 0 : index
    %5 = vector.load %arg4[%c0_4, %c0_5] : memref<256x64xbf16, #tpu.memory_space<vmem>>, vector<256x64xbf16>
    %cst = arith.constant dense<0.000000e+00> : vector<256x64xf32>
    %6 = tpu.matmul %4, %5, %cst {dimension_numbers = #tpu.dot_dimension_numbers<[1], [0], [0], [1], [0, 0, 1, 1], [], []>} : vector<256x256xbf16>, vector<256x64xbf16>, vector<256x64xf32> -> vector<256x64xf32>
    %7 = arith.addf %3, %6 : vector<256x64xf32>
    %c0_6 = arith.constant 0 : index
    %c0_7 = arith.constant 0 : index
    %8 = vector.load %arg6[%c0_6, %c0_7] : memref<256x64xf32, #tpu.memory_space<vmem>>, vector<256x64xf32>
    tpu.vector_store %arg6[%c0_6, %c0_7], %7 {strides = array<i32>} : memref<256x64xf32, #tpu.memory_space<vmem>>, vector<256x64xf32>,
    %c0_i32_8 = arith.constant 0 : i32
    %9 = arith.cmpi eq, %arg2, %c0_i32_8 : i32
    %10 = arith.extui %9 : i1 to i32
    %c0_i32_9 = arith.constant 0 : i32
    %11 = arith.cmpi ne, %10, %c0_i32_9 : i32
    scf.if %11 {
      %c0_10 = arith.constant 0 : index
      %c0_11 = arith.constant 0 : index
      %12 = vector.load %arg6[%c0_10, %c0_11] : memref<256x64xf32, #tpu.memory_space<vmem>>, vector<256x64xf32>
      %13 = arith.truncf %12 : vector<256x64xf32> to vector<256x64xbf16>
      %c0_12 = arith.constant 0 : index
      %c0_13 = arith.constant 0 : index
      %14 = vector.load %arg5[%c0_12, %c0_13] : memref<256x64xbf16, #tpu.memory_space<vmem>>, vector<256x64xbf16>
      tpu.vector_store %arg5[%c0_12, %c0_13], %13 {strides = array<i32>} : memref<256x64xbf16, #tpu.memory_space<vmem>>, vector<256x64xbf16>,
    } else {
    }
    return
  }
  func.func @transform_0(%arg0: i32, %arg1: i32, %arg2: i32) -> (i32, i32) {
    %c0_i32 = arith.constant 0 : i32
    return %arg0, %arg2 : i32, i32
  }
  func.func @transform_1(%arg0: i32, %arg1: i32, %arg2: i32) -> (i32, i32) {
    %c0_i32 = arith.constant 0 : i32
    return %arg2, %arg1 : i32, i32
  }
  func.func @transform_2(%arg0: i32, %arg1: i32, %arg2: i32) -> (i32, i32) {
    %c0_i32 = arith.constant 0 : i32
    return %arg0, %arg1 : i32, i32
  }
}

</mosaic_0001>

<llo_original>
// kernel: tpu_custom_call.1
$region0: #{tpu_custom_call.1}
  #allocation0 [shape = 'u32[]', space=smem, size = 0x4, offset = 0x4, fixed_abs, tag = 'smem constant byte address 0x4 - core index']
  #allocation1 [shape = 'u32[144,128]{1,0:T(1,128)}', space=vmem, size = 0x12000, scoped, tag = 'internal scratch']
  #allocation2 [shape = 'f32[256,64]{1,0:T(8,128)}', space=vmem, size = 0x20000, scoped, tag = 'scratch operand']
  %s0 = inlined_call_operand.hbm [shape: bf16[2048,256], index: 0, kind: input, shape index: {}]
  %s1 = inlined_call_operand.vmem [shape: bf16[256,64], index: 1, kind: input, shape index: {}]
  %s2 = inlined_call_operand.vmem [shape: bf16[2048,64], index: 2, kind: output, shape index: {}]
  %s3 = sld [smem:[#allocation0]]
  $region53: #{tpu_custom_call.1} parent=0
    _
  %s5 = ssub.s32 1, %s3
  %s6 = scalar_select 0, %s5, %s3
  $region1: #{tpu_custom_call.1} parent=0
    #allocation3 [shape = 'u8[262144]{0}', space=vmem, size = 0x40000, scoped, tag = 'input window, operand 0']
    #allocation4 [shape = 's32[2]{0}', space=sflag, size = 0x8, scoped, tag = 'scoped memory for tpu_custom_call.1']
    %7 = vsyncpa [#allocation4], 0
    %s8 = scalar_lea.sflag [#allocation4], 1
    %9 = vsyncpa %s8, 0
    loop: start=0, step=1, limit=10
    $region2: #{tpu_custom_call.1} parent=1 // loop_pre_header
      _
    $region3: #{tpu_custom_call.1} parent=1 // loop_header
      %s11 = sphi 0, %s15
      %p12 = scmp.ge.s32.totalorder %s11, 10
      %s18 = sphi 0, %s37
      %s19 = sphi 0, %s33
      %s20 = sphi 0, %s29
      %s21 = sphi 0, %s18
      %s22 = sphi 0, %s19
      %s23 = sphi 0, %s20
      %s24 = sphi 0, %s21
      %s25 = sphi 0, %s22
      %s26 = sphi 0, %s23
      %s42 = sphi 0, %s44
      %s45 = sphi 0, %s42
      %s46 = sphi 0, %s45
      %s62 = sphi 0, %s46
      %s70 = sphi 0, %s72
      %s73 = sphi 0, %s70
      %s74 = sphi 0, %s73
      %s90 = sphi 0, %s74
      %s98 = sphi 0, %s100
      %s101 = sphi 0, %s98
      %s102 = sphi 0, %s101
      %s118 = sphi 0, %s102
    $region4: #{tpu_custom_call.1} parent=1 // loop_header_branch
      %14 = sbr.rel (%p12) target = $region8
    $region5: #{tpu_custom_call.1} parent=1 // loop_body
      %s16 = ssub.s32 %s11, 1
      %s17 = ssub.s32 %s11, 2
      %s27 = sadd.s32 1, %s20
      %p28 = scmp.ge.s32.totalorder %s27, 1
      %s29 = scalar_select %p28, 0, %s27
      %s30 = sadd.s32 1, %s19
      %s31 = scalar_select %p28, %s30, %s19
      %p32 = scmp.ge.s32.totalorder %s31, 1
      %s33 = scalar_select %p32, 0, %s31
      %s34 = sadd.s32 1, %s18
      %s35 = scalar_select %p32, %s34, %s18
      %p36 = scmp.ge.s32.totalorder %s35, 8
      %s37 = scalar_select %p36, 0, %s35
      %s38 = ssub.s32 %s18, %s37
      %s39 = ssub.s32 %s20, %s29
      %s40 = sor.u32 %s38, %s39
      %p41 = scmp.eq.s32.totalorder %s40, 0
      %s43 = sadd.s32 %s42, 1
      %s44 = scalar_select %p41, %s42, %s43
      %p47 = pneg %p41
      %p48 = scmp.eq.s32.totalorder %s11, 7
      %p49 = por %p47, %p48
      %p50 = scmp.ne.s32.totalorder %s42, %s45
      %p51 = scmp.eq.s32.totalorder %s11, 0
      %p52 = por %p50, %p51
      %p53 = scmp.ne.s32.totalorder %s42, %s45
      %p54 = scmp.eq.s32.totalorder %s16, 7
      %p55 = por %p53, %p54
      %p56 = scmp.ne.s32.totalorder %s45, %s46
      %p57 = scmp.eq.s32.totalorder %s16, 0
      %p58 = por %p56, %p57
      %p59 = scmp.ne.s32.totalorder %s45, %s46
      %p60 = scmp.eq.s32.totalorder %s17, 7
      %p61 = por %p59, %p60
      %p63 = scmp.ne.s32.totalorder %s46, %s62
      %p64 = scmp.eq.s32.totalorder %s17, 0
      %p65 = por %p63, %p64
      %s66 = ssub.s32 %s20, %s29
      %s67 = ssub.s32 %s19, %s33
      %s68 = sor.u32 %s66, %s67
      %p69 = scmp.eq.s32.totalorder %s68, 0
      %s71 = sadd.s32 %s70, 1
      %s72 = scalar_select %p69, %s70, %s71
      %p75 = pneg %p69
      %p76 = scmp.eq.s32.totalorder %s11, 7
      %p77 = por %p75, %p76
      %p78 = scmp.ne.s32.totalorder %s70, %s73
      %p79 = scmp.eq.s32.totalorder %s11, 0
      %p80 = por %p78, %p79
      %p81 = scmp.ne.s32.totalorder %s70, %s73
      %p82 = scmp.eq.s32.totalorder %s16, 7
      %p83 = por %p81, %p82
      %p84 = scmp.ne.s32.totalorder %s73, %s74
      %p85 = scmp.eq.s32.totalorder %s16, 0
      %p86 = por %p84, %p85
      %p87 = scmp.ne.s32.totalorder %s73, %s74
      %p88 = scmp.eq.s32.totalorder %s17, 7
      %p89 = por %p87, %p88
      %p91 = scmp.ne.s32.totalorder %s74, %s90
      %p92 = scmp.eq.s32.totalorder %s17, 0
      %p93 = por %p91, %p92
      %s94 = ssub.s32 %s18, %s37
      %s95 = ssub.s32 %s19, %s33
      %s96 = sor.u32 %s94, %s95
      %p97 = scmp.eq.s32.totalorder %s96, 0
      %s99 = sadd.s32 %s98, 1
      %s100 = scalar_select %p97, %s98, %s99
      %p103 = pneg %p97
      %p104 = scmp.eq.s32.totalorder %s11, 7
      %p105 = por %p103, %p104
      %p106 = scmp.ne.s32.totalorder %s98, %s101
      %p107 = scmp.eq.s32.totalorder %s11, 0
      %p108 = por %p106, %p107
      %p109 = scmp.ne.s32.totalorder %s98, %s101
      %p110 = scmp.eq.s32.totalorder %s16, 7
      %p111 = por %p109, %p110
      %p112 = scmp.ne.s32.totalorder %s101, %s102
      %p113 = scmp.eq.s32.totalorder %s16, 0
      %p114 = por %p112, %p113
      %p115 = scmp.ne.s32.totalorder %s101, %s102
      %p116 = scmp.eq.s32.totalorder %s17, 7
      %p117 = por %p115, %p116
      %p119 = scmp.ne.s32.totalorder %s102, %s118
      %p120 = scmp.eq.s32.totalorder %s17, 0
      %p121 = por %p119, %p120
      %p122 = scmp.le.s32.totalorder 1, %s11
      %p123 = scmp.lt.s32.totalorder %s11, 9
      %p124 = pnand %p122, %p123
      %p125 = pneg %p124
      // Predicated region
      $region9: #{tpu_custom_call.1} parent=5 // pred_check
        _
      $region10: #{tpu_custom_call.1} parent=5 // pred_check_branch
        %127 = sbr.rel (%p124) target = $region12
      $region11: #{tpu_custom_call.1} parent=5 // pred_region
        %s128 = ssub.s32 %s11, 1
        // Predicated region
        $region13: #{tpu_custom_call.1} parent=11 // pred_check
          %p129 = pneg %p86
        $region14: #{tpu_custom_call.1} parent=11 // pred_check_branch
          %131 = sbr.rel (%p129) target = $region16
        $region15: #{tpu_custom_call.1} parent=11 // pred_region
          %s132 = smul.u32 32, %s23
          %p133 = scmp.lt.s32.totalorder %s132, 31
          %s134 = scalar_select %p133, %s132, 31
          %p135 = scmp.lt.s32.totalorder %s22, 0
          %s136 = scalar_select %p135, %s22, 0
          %s137 = sadd.s32 %s136, %s134
          %s138 = smul.addr %s137, 4
          %s139 = scalar_lea.vmem %s1, %s138
          %s140 = smul.u32 32, %s23
        $region16: #{tpu_custom_call.1} parent=11 // pred_fallthru
          _
      $region12: #{tpu_custom_call.1} parent=5 // pred_fallthru
        _
      %p141 = scmp.lt.s32.totalorder %s11, 8
      // Predicated region
      $region17: #{tpu_custom_call.1} parent=5 // pred_check
        %p142 = pneg %p141
      $region18: #{tpu_custom_call.1} parent=5 // pred_check_branch
        %144 = sbr.rel (%p142) target = $region20
      $region19: #{tpu_custom_call.1} parent=5 // pred_region
        // Predicated region
        $region21: #{tpu_custom_call.1} parent=19 // pred_check
          %p145 = pneg %p52
        $region22: #{tpu_custom_call.1} parent=19 // pred_check_branch
          %147 = sbr.rel (%p145) target = $region24
        $region23: #{tpu_custom_call.1} parent=19 // pred_region
          %s148 = sand.u32 %s42, 1
          %s149 = scalar_lea.sflag [#allocation4], %s148
          %s150 = sand.u32 %s42, 1
          %s151 = smul.addr %s150, 256
          %s152 = scalar_lea.vmem [#allocation3], %s151
          %s153 = smul.u32 32, %s18
          %s154 = smul.u32 2, %s20
          %s156 = ssub.s32 4096, 4096
          %157 = vsyncadd %s149, %s156
          %s158 = smul.addr %s153, 2
          %s159 = sadd.s32 %s154, %s158
          %s160 = smul.addr %s159, 64
          %s161 = scalar_lea.hbm %s0, %s160
          %s162 = sshll.u32 %s152, 4
          %s163 = int_to_ptr.vmem [resolvable:$true] %s162
          %168 = dma.hbm_to_vmem [thread:$0]  %s161, 4096, %s163, %s149, 128, 128, 8
        $region24: #{tpu_custom_call.1} parent=19 // pred_fallthru
          _
      $region20: #{tpu_custom_call.1} parent=5 // pred_fallthru
        _
      %p169 = scmp.le.s32.totalorder 1, %s11
      %p170 = scmp.lt.s32.totalorder %s11, 9
      %p171 = pnand %p169, %p170
      %p172 = pneg %p171
      // Predicated region
      $region25: #{tpu_custom_call.1} parent=5 // pred_check
        _
      $region26: #{tpu_custom_call.1} parent=5 // pred_check_branch
        %174 = sbr.rel (%p171) target = $region28
      $region27: #{tpu_custom_call.1} parent=5 // pred_region
        %s175 = ssub.s32 %s11, 1
        %s176 = sand.u32 %s45, 1
        %s177 = scalar_lea.sflag [#allocation4], %s176
        %s178 = sand.u32 %s45, 1
        %s179 = smul.addr %s178, 256
        %s180 = scalar_lea.vmem [#allocation3], %s179
        // Predicated region
        $region29: #{tpu_custom_call.1} parent=27 // pred_check
          %p181 = pneg %p58
        $region30: #{tpu_custom_call.1} parent=27 // pred_check_branch
          %183 = sbr.rel (%p181) target = $region32
        $region31: #{tpu_custom_call.1} parent=27 // pred_region
          %184 = dma.done %s177, 4096
        $region32: #{tpu_custom_call.1} parent=27 // pred_fallthru
          _
        %s185 = sand.u32 %s45, 1
        %s186 = scalar_lea.sflag [#allocation4], %s185
        %s187 = sand.u32 %s45, 1
        %s188 = smul.addr %s187, 256
        %s189 = scalar_lea.vmem [#allocation3], %s188
        %p190 = pneg %p58
        %p191 = pneg %p55
        %s192 = smul.u32 32, %s23
        %p193 = scmp.lt.s32.totalorder %s192, 31
        %s194 = scalar_select %p193, %s192, 31
        %p195 = scmp.lt.s32.totalorder %s22, 0
        %s196 = scalar_select %p195, %s22, 0
        %s197 = sadd.s32 %s196, %s194
        %s198 = smul.addr %s197, 4
        %s199 = scalar_lea.vmem %s1, %s198
        %p200 = pneg %p86
        %p201 = pneg %p83
        %p202 = pneg %p114
        %p203 = pneg %p111
        %s204 = smul.u32 32, %s21
        %p205 = scmp.lt.s32.totalorder %s204, 255
        %s206 = scalar_select %p205, %s204, 255
        %p207 = scmp.lt.s32.totalorder %s22, 0
        %s208 = scalar_select %p207, %s22, 0
        %s209 = sadd.s32 %s208, %s206
        %s210 = smul.addr %s209, 4
        %s211 = scalar_lea.vmem %s2, %s210
        %s212 = smul.u32 32, %s21
        %s213 = smul.u32 2, %s23
        %s214 = smul.u32 32, %s23
        %p215 = scmp.lt.s32.totalorder %s214, 31
        %s216 = scalar_select %p215, %s214, 31
        %p217 = scmp.lt.s32.totalorder %s22, 0
        %s218 = scalar_select %p217, %s22, 0
        %s219 = sadd.s32 %s218, %s216
        %s220 = smul.addr %s219, 4
        %s221 = scalar_lea.vmem %s1, %s220
        %s222 = smul.u32 32, %s23
        %s223 = smul.u32 32, %s21
        %p224 = scmp.lt.s32.totalorder %s223, 255
        %s225 = scalar_select %p224, %s223, 255
        %p226 = scmp.lt.s32.totalorder %s22, 0
        %s227 = scalar_select %p226, %s22, 0
        %s228 = sadd.s32 %s227, %s225
        %s229 = smul.addr %s228, 4
        %s230 = scalar_lea.vmem %s2, %s229
        %s231 = smul.u32 32, %s21
        %p233 = scmp.eq.s32.totalorder %s23, 0
        // Predicated region
        $region33: #{tpu_custom_call.1} parent=27 // pred_check
          %p234 = pneg %p233
        $region34: #{tpu_custom_call.1} parent=27 // pred_check_branch
          %236 = sbr.rel (%p234) target = $region36
        $region35: #{tpu_custom_call.1} parent=27 // pred_region
          %vm237 = vcmask 523264
          %238 = vst.msk [vmem:[#allocation2] sm:$0xff] %vm237, 0.0
          %239 = vst.msk [vmem:[#allocation2 + $0x8] sm:$0xff] %vm237, 0.0
          %240 = vst.msk [vmem:[#allocation2 + $0x10] sm:$0xff] %vm237, 0.0
          %241 = vst.msk [vmem:[#allocation2 + $0x18] sm:$0xff] %vm237, 0.0
          %242 = vst.msk [vmem:[#allocation2 + $0x20] sm:$0xff] %vm237, 0.0
          %243 = vst.msk [vmem:[#allocation2 + $0x28] sm:$0xff] %vm237, 0.0
          %244 = vst.msk [vmem:[#allocation2 + $0x30] sm:$0xff] %vm237, 0.0
          %245 = vst.msk [vmem:[#allocation2 + $0x38] sm:$0xff] %vm237, 0.0
          %246 = vst.msk [vmem:[#allocation2 + $0x40] sm:$0xff] %vm237, 0.0
          %247 = vst.msk [vmem:[#allocation2 + $0x48] sm:$0xff] %vm237, 0.0
          %248 = vst.msk [vmem:[#allocation2 + $0x50] sm:$0xff] %vm237, 0.0
          %249 = vst.msk [vmem:[#allocation2 + $0x58] sm:$0xff] %vm237, 0.0
          %250 = vst.msk [vmem:[#allocation2 + $0x60] sm:$0xff] %vm237, 0.0
          %251 = vst.msk [vmem:[#allocation2 + $0x68] sm:$0xff] %vm237, 0.0
          %252 = vst.msk [vmem:[#allocation2 + $0x70] sm:$0xff] %vm237, 0.0
          %253 = vst.msk [vmem:[#allocation2 + $0x78] sm:$0xff] %vm237, 0.0
          %254 = vst.msk [vmem:[#allocation2 + $0x80] sm:$0xff] %vm237, 0.0
          %255 = vst.msk [vmem:[#allocation2 + $0x88] sm:$0xff] %vm237, 0.0
          %256 = vst.msk [vmem:[#allocation2 + $0x90] sm:$0xff] %vm237, 0.0
          %257 = vst.msk [vmem:[#allocation2 + $0x98] sm:$0xff] %vm237, 0.0
          %258 = vst.msk [vmem:[#allocation2 + $0xa0] sm:$0xff] %vm237, 0.0
          %259 = vst.msk [vmem:[#allocation2 + $0xa8] sm:$0xff] %vm237, 0.0
          %260 = vst.msk [vmem:[#allocation2 + $0xb0] sm:$0xff] %vm237, 0.0
          %261 = vst.msk [vmem:[#allocation2 + $0xb8] sm:$0xff] %vm237, 0.0
          %262 = vst.msk [vmem:[#allocation2 + $0xc0] sm:$0xff] %vm237, 0.0
          %263 = vst.msk [vmem:[#allocation2 + $0xc8] sm:$0xff] %vm237, 0.0
          %264 = vst.msk [vmem:[#allocation2 + $0xd0] sm:$0xff] %vm237, 0.0
          %265 = vst.msk [vmem:[#allocation2 + $0xd8] sm:$0xff] %vm237, 0.0
          %266 = vst.msk [vmem:[#allocation2 + $0xe0] sm:$0xff] %vm237, 0.0
          %267 = vst.msk [vmem:[#allocation2 + $0xe8] sm:$0xff] %vm237, 0.0
          %268 = vst.msk [vmem:[#allocation2 + $0xf0] sm:$0xff] %vm237, 0.0
          %269 = vst.msk [vmem:[#allocation2 + $0xf8] sm:$0xff] %vm237, 0.0
        $region36: #{tpu_custom_call.1} parent=27 // pred_fallthru
          _
        %v270 = vld [vmem:[#allocation2] sm:$0xff]
        %v271 = vld [vmem:[#allocation2 + $0x8] sm:$0xff]
        %v272 = vld [vmem:[#allocation2 + $0x10] sm:$0xff]
        %v273 = vld [vmem:[#allocation2 + $0x18] sm:$0xff]
        %v274 = vld [vmem:[#allocation2 + $0x20] sm:$0xff]
        %v275 = vld [vmem:[#allocation2 + $0x28] sm:$0xff]
        %v276 = vld [vmem:[#allocation2 + $0x30] sm:$0xff]
        %v277 = vld [vmem:[#allocation2 + $0x38] sm:$0xff]
        %v278 = vld [vmem:[#allocation2 + $0x40] sm:$0xff]
        %v279 = vld [vmem:[#allocation2 + $0x48] sm:$0xff]
        %v280 = vld [vmem:[#allocation2 + $0x50] sm:$0xff]
        %v281 = vld [vmem:[#allocation2 + $0x58] sm:$0xff]
        %v282 = vld [vmem:[#allocation2 + $0x60] sm:$0xff]
        %v283 = vld [vmem:[#allocation2 + $0x68] sm:$0xff]
        %v284 = vld [vmem:[#allocation2 + $0x70] sm:$0xff]
        %v285 = vld [vmem:[#allocation2 + $0x78] sm:$0xff]
        %v286 = vld [vmem:[#allocation2 + $0x80] sm:$0xff]
        %v287 = vld [vmem:[#allocation2 + $0x88] sm:$0xff]
        %v288 = vld [vmem:[#allocation2 + $0x90] sm:$0xff]
        %v289 = vld [vmem:[#allocation2 + $0x98] sm:$0xff]
        %v290 = vld [vmem:[#allocation2 + $0xa0] sm:$0xff]
        %v291 = vld [vmem:[#allocation2 + $0xa8] sm:$0xff]
        %v292 = vld [vmem:[#allocation2 + $0xb0] sm:$0xff]
        %v293 = vld [vmem:[#allocation2 + $0xb8] sm:$0xff]
        %v294 = vld [vmem:[#allocation2 + $0xc0] sm:$0xff]
        %v295 = vld [vmem:[#allocation2 + $0xc8] sm:$0xff]
        %v296 = vld [vmem:[#allocation2 + $0xd0] sm:$0xff]
        %v297 = vld [vmem:[#allocation2 + $0xd8] sm:$0xff]
        %v298 = vld [vmem:[#allocation2 + $0xe0] sm:$0xff]
        %v299 = vld [vmem:[#allocation2 + $0xe8] sm:$0xff]
        %v300 = vld [vmem:[#allocation2 + $0xf0] sm:$0xff]
        %v301 = vld [vmem:[#allocation2 + $0xf8] sm:$0xff]
        %v302 = vld [vmem:[%s180] sm:$0xff]
        %v303 = vld [vmem:[%s180 + $0x8] sm:$0xff]
        %v304 = vld [vmem:[%s180 + $0x10] sm:$0xff]
        %v305 = vld [vmem:[%s180 + $0x18] sm:$0xff]
        %v306 = vld [vmem:[%s180 + $0x20] sm:$0xff]
        %v307 = vld [vmem:[%s180 + $0x28] sm:$0xff]
        %v308 = vld [vmem:[%s180 + $0x30] sm:$0xff]
        %v309 = vld [vmem:[%s180 + $0x38] sm:$0xff]
        %v310 = vld [vmem:[%s180 + $0x40] sm:$0xff]
        %v311 = vld [vmem:[%s180 + $0x48] sm:$0xff]
        %v312 = vld [vmem:[%s180 + $0x50] sm:$0xff]
        %v313 = vld [vmem:[%s180 + $0x58] sm:$0xff]
        %v314 = vld [vmem:[%s180 + $0x60] sm:$0xff]
        %v315 = vld [vmem:[%s180 + $0x68] sm:$0xff]
        %v316 = vld [vmem:[%s180 + $0x70] sm:$0xff]
        %v317 = vld [vmem:[%s180 + $0x78] sm:$0xff]
        %v318 = vld [vmem:[%s180 + $0x80] sm:$0xff]
        %v319 = vld [vmem:[%s180 + $0x88] sm:$0xff]
        %v320 = vld [vmem:[%s180 + $0x90] sm:$0xff]
        %v321 = vld [vmem:[%s180 + $0x98] sm:$0xff]
        %v322 = vld [vmem:[%s180 + $0xa0] sm:$0xff]
        %v323 = vld [vmem:[%s180 + $0xa8] sm:$0xff]
        %v324 = vld [vmem:[%s180 + $0xb0] sm:$0xff]
        %v325 = vld [vmem:[%s180 + $0xb8] sm:$0xff]
        %v326 = vld [vmem:[%s180 + $0xc0] sm:$0xff]
        %v327 = vld [vmem:[%s180 + $0xc8] sm:$0xff]
        %v328 = vld [vmem:[%s180 + $0xd0] sm:$0xff]
        %v329 = vld [vmem:[%s180 + $0xd8] sm:$0xff]
        %v330 = vld [vmem:[%s180 + $0xe0] sm:$0xff]
        %v331 = vld [vmem:[%s180 + $0xe8] sm:$0xff]
        %v332 = vld [vmem:[%s180 + $0xf0] sm:$0xff]
        %v333 = vld [vmem:[%s180 + $0xf8] sm:$0xff]
        %v334 = vld [vmem:[%s221] sm:$0xf]
        %v335 = vld [vmem:[%s221 + $0x4] sm:$0xf]
        %v336 = vld [vmem:[%s221 + $0x8] sm:$0xf]
        %v337 = vld [vmem:[%s221 + $0xc] sm:$0xf]
        %v338 = vld [vmem:[%s221 + $0x10] sm:$0xf]
        %v339 = vld [vmem:[%s221 + $0x14] sm:$0xf]
        %v340 = vld [vmem:[%s221 + $0x18] sm:$0xf]
        %v341 = vld [vmem:[%s221 + $0x1c] sm:$0xf]
        %v342 = vld [vmem:[%s221 + $0x20] sm:$0xf]
        %v343 = vld [vmem:[%s221 + $0x24] sm:$0xf]
        %v344 = vld [vmem:[%s221 + $0x28] sm:$0xf]
        %v345 = vld [vmem:[%s221 + $0x2c] sm:$0xf]
        %v346 = vld [vmem:[%s221 + $0x30] sm:$0xf]
        %v347 = vld [vmem:[%s221 + $0x34] sm:$0xf]
        %v348 = vld [vmem:[%s221 + $0x38] sm:$0xf]
        %v349 = vld [vmem:[%s221 + $0x3c] sm:$0xf]
        %v350 = vld [vmem:[%s221 + $0x40] sm:$0xf]
        %v351 = vld [vmem:[%s221 + $0x44] sm:$0xf]
        %v352 = vld [vmem:[%s221 + $0x48] sm:$0xf]
        %v353 = vld [vmem:[%s221 + $0x4c] sm:$0xf]
        %v354 = vld [vmem:[%s221 + $0x50] sm:$0xf]
        %v355 = vld [vmem:[%s221 + $0x54] sm:$0xf]
        %v356 = vld [vmem:[%s221 + $0x58] sm:$0xf]
        %v357 = vld [vmem:[%s221 + $0x5c] sm:$0xf]
        %v358 = vld [vmem:[%s221 + $0x60] sm:$0xf]
        %v359 = vld [vmem:[%s221 + $0x64] sm:$0xf]
        %v360 = vld [vmem:[%s221 + $0x68] sm:$0xf]
        %v361 = vld [vmem:[%s221 + $0x6c] sm:$0xf]
        %v362 = vld [vmem:[%s221 + $0x70] sm:$0xf]
        %v363 = vld [vmem:[%s221 + $0x74] sm:$0xf]
        %v364 = vld [vmem:[%s221 + $0x78] sm:$0xf]
        %v365 = vld [vmem:[%s221 + $0x7c] sm:$0xf]
        %v398 = vunpack.c.l.b16 %v302
        %v399 = vunpack.c.h.b16 %v302
        %v400 = vunpack.c.l.b16 %v303
        %v401 = vunpack.c.h.b16 %v303
        %v402 = vunpack.c.l.b16 %v304
        %v403 = vunpack.c.h.b16 %v304
        %v404 = vunpack.c.l.b16 %v305
        %v405 = vunpack.c.h.b16 %v305
        %v406 = vunpack.c.l.b16 %v306
        %v407 = vunpack.c.h.b16 %v306
        %v408 = vunpack.c.l.b16 %v307
        %v409 = vunpack.c.h.b16 %v307
        %v410 = vunpack.c.l.b16 %v308
        %v411 = vunpack.c.h.b16 %v308
        %v412 = vunpack.c.l.b16 %v309
        %v413 = vunpack.c.h.b16 %v309
        %v414 = vunpack.c.l.b16 %v310
        %v415 = vunpack.c.h.b16 %v310
        %v416 = vunpack.c.l.b16 %v311
        %v417 = vunpack.c.h.b16 %v311
        %v418 = vunpack.c.l.b16 %v312
        %v419 = vunpack.c.h.b16 %v312
        %v420 = vunpack.c.l.b16 %v313
        %v421 = vunpack.c.h.b16 %v313
        %v422 = vunpack.c.l.b16 %v314
        %v423 = vunpack.c.h.b16 %v314
        %v424 = vunpack.c.l.b16 %v315
        %v425 = vunpack.c.h.b16 %v315
        %v426 = vunpack.c.l.b16 %v316
        %v427 = vunpack.c.h.b16 %v316
        %v428 = vunpack.c.l.b16 %v317
        %v429 = vunpack.c.h.b16 %v317
        %v430 = vunpack.c.l.b16 %v318
        %v431 = vunpack.c.h.b16 %v318
        %v432 = vunpack.c.l.b16 %v319
        %v433 = vunpack.c.h.b16 %v319
        %v434 = vunpack.c.l.b16 %v320
        %v435 = vunpack.c.h.b16 %v320
        %v436 = vunpack.c.l.b16 %v321
        %v437 = vunpack.c.h.b16 %v321
        %v438 = vunpack.c.l.b16 %v322
        %v439 = vunpack.c.h.b16 %v322
        %v440 = vunpack.c.l.b16 %v323
        %v441 = vunpack.c.h.b16 %v323
        %v442 = vunpack.c.l.b16 %v324
        %v443 = vunpack.c.h.b16 %v324
        %v444 = vunpack.c.l.b16 %v325
        %v445 = vunpack.c.h.b16 %v325
        %v446 = vunpack.c.l.b16 %v326
        %v447 = vunpack.c.h.b16 %v326
        %v448 = vunpack.c.l.b16 %v327
        %v449 = vunpack.c.h.b16 %v327
        %v450 = vunpack.c.l.b16 %v328
        %v451 = vunpack.c.h.b16 %v328
        %v452 = vunpack.c.l.b16 %v329
        %v453 = vunpack.c.h.b16 %v329
        %v454 = vunpack.c.l.b16 %v330
        %v455 = vunpack.c.h.b16 %v330
        %v456 = vunpack.c.l.b16 %v331
        %v457 = vunpack.c.h.b16 %v331
        %v458 = vunpack.c.l.b16 %v332
        %v459 = vunpack.c.h.b16 %v332
        %v460 = vunpack.c.l.b16 %v333
        %v461 = vunpack.c.h.b16 %v333
        %v462 = vpack.c.b16 %v400, %v398
        %v463 = vpack.c.b16 %v401, %v399
        %v464 = vpack.c.b16 %v404, %v402
        %v465 = vpack.c.b16 %v405, %v403
        %v466 = vpack.c.b16 %v408, %v406
        %v467 = vpack.c.b16 %v409, %v407
        %v468 = vpack.c.b16 %v412, %v410
        %v469 = vpack.c.b16 %v413, %v411
        %v470 = vpack.c.b16 %v416, %v414
        %v471 = vpack.c.b16 %v417, %v415
        %v472 = vpack.c.b16 %v420, %v418
        %v473 = vpack.c.b16 %v421, %v419
        %v474 = vpack.c.b16 %v424, %v422
        %v475 = vpack.c.b16 %v425, %v423
        %v476 = vpack.c.b16 %v428, %v426
        %v477 = vpack.c.b16 %v429, %v427
        %v478 = vpack.c.b16 %v432, %v430
        %v479 = vpack.c.b16 %v433, %v431
        %v480 = vpack.c.b16 %v436, %v434
        %v481 = vpack.c.b16 %v437, %v435
        %v482 = vpack.c.b16 %v440, %v438
        %v483 = vpack.c.b16 %v441, %v439
        %v484 = vpack.c.b16 %v444, %v442
        %v485 = vpack.c.b16 %v445, %v443
        %v486 = vpack.c.b16 %v448, %v446
        %v487 = vpack.c.b16 %v449, %v447
        %v488 = vpack.c.b16 %v452, %v450
        %v489 = vpack.c.b16 %v453, %v451
        %v490 = vpack.c.b16 %v456, %v454
        %v491 = vpack.c.b16 %v457, %v455
        %v492 = vpack.c.b16 %v460, %v458
        %v493 = vpack.c.b16 %v461, %v459
        %v558 = vunpack.c.l.b16 %v334
        %v559 = vunpack.c.l.b16 %v335
        %v560 = vunpack.c.l.b16 %v336
        %v561 = vunpack.c.l.b16 %v337
        %v562 = vunpack.c.l.b16 %v338
        %v563 = vunpack.c.l.b16 %v339
        %v564 = vunpack.c.l.b16 %v340
        %v565 = vunpack.c.l.b16 %v341
        %v566 = vunpack.c.l.b16 %v342
        %v567 = vunpack.c.l.b16 %v343
        %v568 = vunpack.c.l.b16 %v344
        %v569 = vunpack.c.l.b16 %v345
        %v570 = vunpack.c.l.b16 %v346
        %v571 = vunpack.c.l.b16 %v347
        %v572 = vunpack.c.l.b16 %v348
        %v573 = vunpack.c.l.b16 %v349
        %v574 = vunpack.c.l.b16 %v350
        %v575 = vunpack.c.l.b16 %v351
        %v576 = vunpack.c.l.b16 %v352
        %v577 = vunpack.c.l.b16 %v353
        %v578 = vunpack.c.l.b16 %v354
        %v579 = vunpack.c.l.b16 %v355
        %v580 = vunpack.c.l.b16 %v356
        %v581 = vunpack.c.l.b16 %v357
        %v582 = vunpack.c.l.b16 %v358
        %v583 = vunpack.c.l.b16 %v359
        %v584 = vunpack.c.l.b16 %v360
        %v585 = vunpack.c.l.b16 %v361
        %v586 = vunpack.c.l.b16 %v362
        %v587 = vunpack.c.l.b16 %v363
        %v588 = vunpack.c.l.b16 %v364
        %v589 = vunpack.c.l.b16 %v365
        %v590 = vpack.c.b16 %v559, %v558
        %v591 = vpack.c.b16 %v561, %v560
        %v592 = vpack.c.b16 %v563, %v562
        %v593 = vpack.c.b16 %v565, %v564
        %v594 = vpack.c.b16 %v567, %v566
        %v595 = vpack.c.b16 %v569, %v568
        %v596 = vpack.c.b16 %v571, %v570
        %v597 = vpack.c.b16 %v573, %v572
        %v598 = vpack.c.b16 %v575, %v574
        %v599 = vpack.c.b16 %v577, %v576
        %v600 = vpack.c.b16 %v579, %v578
        %v601 = vpack.c.b16 %v581, %v580
        %v602 = vpack.c.b16 %v583, %v582
        %v603 = vpack.c.b16 %v585, %v584
        %v604 = vpack.c.b16 %v587, %v586
        %v605 = vpack.c.b16 %v589, %v588
        %622 = vmatprep.subr.bf16.mxu0 0
        %623 = vmatpush1.bf16.msra.mxu0 %v590
        %624 = vmatprep.subr.bf16.mxu0 0
        %625 = vmatpush1.bf16.msra.mxu0 %v591
        %626 = vmatprep.subr.bf16.mxu0 0
        %627 = vmatpush1.bf16.msra.mxu0 %v592
        %628 = vmatprep.subr.bf16.mxu0 0
        %629 = vmatpush1.bf16.msra.mxu0 %v593
        %630 = vmatprep.subr.bf16.mxu0 0
        %631 = vmatpush1.bf16.msra.mxu0 %v594
        %632 = vmatprep.subr.bf16.mxu0 0
        %633 = vmatpush1.bf16.msra.mxu0 %v595
        %634 = vmatprep.subr.bf16.mxu0 0
        %635 = vmatpush1.bf16.msra.mxu0 %v596
        %636 = vmatprep.subr.bf16.mxu0 0
        %637 = vmatpush1.bf16.msra.mxu0 %v597
        %638 = vmatprep.subr.bf16.mxu0 0
        %639 = vmatpush1.bf16.msra.mxu0 %v598
        %640 = vmatprep.subr.bf16.mxu0 0
        %641 = vmatpush1.bf16.msra.mxu0 %v599
        %642 = vmatprep.subr.bf16.mxu0 0
        %643 = vmatpush1.bf16.msra.mxu0 %v600
        %644 = vmatprep.subr.bf16.mxu0 0
        %645 = vmatpush1.bf16.msra.mxu0 %v601
        %646 = vmatprep.subr.bf16.mxu0 0
        %647 = vmatpush1.bf16.msra.mxu0 %v602
        %648 = vmatprep.subr.bf16.mxu0 0
        %649 = vmatpush1.bf16.msra.mxu0 %v603
        %650 = vmatprep.subr.bf16.mxu0 0
        %651 = vmatpush1.bf16.msra.mxu0 %v604
        %652 = vmatprep.subr.bf16.mxu0 0
        %653 = vmatpush1.bf16.msra.mxu0 %v605
        %654 = vmatprep.mubr.bf16.mxu0 %v463
        %655 = vmatmul.mubr.bf16.gmra.mrb[0].mxu0 %v462
        %v656 = vpop.f32.mrb[0].mxu0
        %v657 = vadd.f32 0.0, %v656
        %v658 = vpop.f32.mrb[0].mxu0
        %v659 = vpop.f32.mrb[0].mxu0
        %v660 = vadd.f32 0.0, %v659
        %v661 = vpop.f32.mrb[0].mxu0
        %662 = vmatprep.mubr.bf16.mxu0 %v465
        %663 = vmatmul.mubr.bf16.gmra.mrb[0].mxu0 %v464
        %v664 = vpop.f32.mrb[0].mxu0
        %v665 = vadd.f32 0.0, %v664
        %v666 = vpop.f32.mrb[0].mxu0
        %v667 = vpop.f32.mrb[0].mxu0
        %v668 = vadd.f32 0.0, %v667
        %v669 = vpop.f32.mrb[0].mxu0
        %670 = vmatprep.mubr.bf16.mxu0 %v467
        %671 = vmatmul.mubr.bf16.gmra.mrb[0].mxu0 %v466
        %v672 = vpop.f32.mrb[0].mxu0
        %v673 = vadd.f32 0.0, %v672
        %v674 = vpop.f32.mrb[0].mxu0
        %v675 = vpop.f32.mrb[0].mxu0
        %v676 = vadd.f32 0.0, %v675
        %v677 = vpop.f32.mrb[0].mxu0
        %678 = vmatprep.mubr.bf16.mxu0 %v469
        %679 = vmatmul.mubr.bf16.gmra.mrb[0].mxu0 %v468
        %v680 = vpop.f32.mrb[0].mxu0
        %v681 = vadd.f32 0.0, %v680
        %v682 = vpop.f32.mrb[0].mxu0
        %v683 = vpop.f32.mrb[0].mxu0
        %v684 = vadd.f32 0.0, %v683
        %v685 = vpop.f32.mrb[0].mxu0
        %686 = vmatprep.mubr.bf16.mxu0 %v471
        %687 = vmatmul.mubr.bf16.gmra.mrb[0].mxu0 %v470
        %v688 = vpop.f32.mrb[0].mxu0
        %v689 = vadd.f32 0.0, %v688
        %v690 = vpop.f32.mrb[0].mxu0
        %v691 = vpop.f32.mrb[0].mxu0
        %v692 = vadd.f32 0.0, %v691
        %v693 = vpop.f32.mrb[0].mxu0
        %694 = vmatprep.mubr.bf16.mxu0 %v473
        %695 = vmatmul.mubr.bf16.gmra.mrb[0].mxu0 %v472
        %v696 = vpop.f32.mrb[0].mxu0
        %v697 = vadd.f32 0.0, %v696
        %v698 = vpop.f32.mrb[0].mxu0
        %v699 = vpop.f32.mrb[0].mxu0
        %v700 = vadd.f32 0.0, %v699
        %v701 = vpop.f32.mrb[0].mxu0
        %702 = vmatprep.mubr.bf16.mxu0 %v475
        %703 = vmatmul.mubr.bf16.gmra.mrb[0].mxu0 %v474
        %v704 = vpop.f32.mrb[0].mxu0
        %v705 = vadd.f32 0.0, %v704
        %v706 = vpop.f32.mrb[0].mxu0
        %v707 = vpop.f32.mrb[0].mxu0
        %v708 = vadd.f32 0.0, %v707
        %v709 = vpop.f32.mrb[0].mxu0
        %710 = vmatprep.mubr.bf16.mxu0 %v477
        %711 = vmatmul.mubr.bf16.gmra.mrb[0].mxu0 %v476
        %v712 = vpop.f32.mrb[0].mxu0
        %v713 = vadd.f32 0.0, %v712
        %v714 = vpop.f32.mrb[0].mxu0
        %v715 = vpop.f32.mrb[0].mxu0
        %v716 = vadd.f32 0.0, %v715
        %v717 = vpop.f32.mrb[0].mxu0
        %718 = vmatprep.mubr.bf16.mxu0 %v479
        %719 = vmatmul.mubr.bf16.gmra.mrb[0].mxu0 %v478
        %v720 = vpop.f32.mrb[0].mxu0
        %v721 = vadd.f32 0.0, %v720
        %v722 = vpop.f32.mrb[0].mxu0
        %v723 = vpop.f32.mrb[0].mxu0
        %v724 = vadd.f32 0.0, %v723
        %v725 = vpop.f32.mrb[0].mxu0
        %726 = vmatprep.mubr.bf16.mxu0 %v481
        %727 = vmatmul.mubr.bf16.gmra.mrb[0].mxu0 %v480
        %v728 = vpop.f32.mrb[0].mxu0
        %v729 = vadd.f32 0.0, %v728
        %v730 = vpop.f32.mrb[0].mxu0
        %v731 = vpop.f32.mrb[0].mxu0
        %v732 = vadd.f32 0.0, %v731
        %v733 = vpop.f32.mrb[0].mxu0
        %734 = vmatprep.mubr.bf16.mxu0 %v483
        %735 = vmatmul.mubr.bf16.gmra.mrb[0].mxu0 %v482
        %v736 = vpop.f32.mrb[0].mxu0
        %v737 = vadd.f32 0.0, %v736
        %v738 = vpop.f32.mrb[0].mxu0
        %v739 = vpop.f32.mrb[0].mxu0
        %v740 = vadd.f32 0.0, %v739
        %v741 = vpop.f32.mrb[0].mxu0
        %742 = vmatprep.mubr.bf16.mxu0 %v485
        %743 = vmatmul.mubr.bf16.gmra.mrb[0].mxu0 %v484
        %v744 = vpop.f32.mrb[0].mxu0
        %v745 = vadd.f32 0.0, %v744
        %v746 = vpop.f32.mrb[0].mxu0
        %v747 = vpop.f32.mrb[0].mxu0
        %v748 = vadd.f32 0.0, %v747
        %v749 = vpop.f32.mrb[0].mxu0
        %750 = vmatprep.mubr.bf16.mxu0 %v487
        %751 = vmatmul.mubr.bf16.gmra.mrb[0].mxu0 %v486
        %v752 = vpop.f32.mrb[0].mxu0
        %v753 = vadd.f32 0.0, %v752
        %v754 = vpop.f32.mrb[0].mxu0
        %v755 = vpop.f32.mrb[0].mxu0
        %v756 = vadd.f32 0.0, %v755
        %v757 = vpop.f32.mrb[0].mxu0
        %758 = vmatprep.mubr.bf16.mxu0 %v489
        %759 = vmatmul.mubr.bf16.gmra.mrb[0].mxu0 %v488
        %v760 = vpop.f32.mrb[0].mxu0
        %v761 = vadd.f32 0.0, %v760
        %v762 = vpop.f32.mrb[0].mxu0
        %v763 = vpop.f32.mrb[0].mxu0
        %v764 = vadd.f32 0.0, %v763
        %v765 = vpop.f32.mrb[0].mxu0
        %766 = vmatprep.mubr.bf16.mxu0 %v491
        %767 = vmatmul.mubr.bf16.gmra.mrb[0].mxu0 %v490
        %v768 = vpop.f32.mrb[0].mxu0
        %v769 = vadd.f32 0.0, %v768
        %v770 = vpop.f32.mrb[0].mxu0
        %v771 = vpop.f32.mrb[0].mxu0
        %v772 = vadd.f32 0.0, %v771
        %v773 = vpop.f32.mrb[0].mxu0
        %774 = vmatprep.mubr.bf16.mxu0 %v493
        %775 = vmatmul.mubr.bf16.gmra.mrb[0].mxu0 %v492
        %v776 = vpop.f32.mrb[0].mxu0
        %v777 = vadd.f32 0.0, %v776
        %v778 = vpop.f32.mrb[0].mxu0
        %v779 = vpop.f32.mrb[0].mxu0
        %v780 = vadd.f32 0.0, %v779
        %v781 = vpop.f32.mrb[0].mxu0
        %782 = vdwg.mxu0
        %v783 = vadd.f32 %v270, %v657
        %v784 = vadd.f32 %v271, %v660
        %v785 = vadd.f32 %v272, %v665
        %v786 = vadd.f32 %v273, %v668
        %v787 = vadd.f32 %v274, %v673
        %v788 = vadd.f32 %v275, %v676
        %v789 = vadd.f32 %v276, %v681
        %v790 = vadd.f32 %v277, %v684
        %v791 = vadd.f32 %v278, %v689
        %v792 = vadd.f32 %v279, %v692
        %v793 = vadd.f32 %v280, %v697
        %v794 = vadd.f32 %v281, %v700
        %v795 = vadd.f32 %v282, %v705
        %v796 = vadd.f32 %v283, %v708
        %v797 = vadd.f32 %v284, %v713
        %v798 = vadd.f32 %v285, %v716
        %v799 = vadd.f32 %v286, %v721
        %v800 = vadd.f32 %v287, %v724
        %v801 = vadd.f32 %v288, %v729
        %v802 = vadd.f32 %v289, %v732
        %v803 = vadd.f32 %v290, %v737
        %v804 = vadd.f32 %v291, %v740
        %v805 = vadd.f32 %v292, %v745
        %v806 = vadd.f32 %v293, %v748
        %v807 = vadd.f32 %v294, %v753
        %v808 = vadd.f32 %v295, %v756
        %v809 = vadd.f32 %v296, %v761
        %v810 = vadd.f32 %v297, %v764
        %v811 = vadd.f32 %v298, %v769
        %v812 = vadd.f32 %v299, %v772
        %v813 = vadd.f32 %v300, %v777
        %v814 = vadd.f32 %v301, %v780
        %vm815 = vcmask 523264
        %816 = vst.msk [vmem:[#allocation2] sm:$0xff] %vm815, %v783
        %817 = vst.msk [vmem:[#allocation2 + $0x8] sm:$0xff] %vm815, %v784
        %818 = vst.msk [vmem:[#allocation2 + $0x10] sm:$0xff] %vm815, %v785
        %819 = vst.msk [vmem:[#allocation2 + $0x18] sm:$0xff] %vm815, %v786
        %820 = vst.msk [vmem:[#allocation2 + $0x20] sm:$0xff] %vm815, %v787
        %821 = vst.msk [vmem:[#allocation2 + $0x28] sm:$0xff] %vm815, %v788
        %822 = vst.msk [vmem:[#allocation2 + $0x30] sm:$0xff] %vm815, %v789
        %823 = vst.msk [vmem:[#allocation2 + $0x38] sm:$0xff] %vm815, %v790
        %824 = vst.msk [vmem:[#allocation2 + $0x40] sm:$0xff] %vm815, %v791
        %825 = vst.msk [vmem:[#allocation2 + $0x48] sm:$0xff] %vm815, %v792
        %826 = vst.msk [vmem:[#allocation2 + $0x50] sm:$0xff] %vm815, %v793
        %827 = vst.msk [vmem:[#allocation2 + $0x58] sm:$0xff] %vm815, %v794
        %828 = vst.msk [vmem:[#allocation2 + $0x60] sm:$0xff] %vm815, %v795
        %829 = vst.msk [vmem:[#allocation2 + $0x68] sm:$0xff] %vm815, %v796
        %830 = vst.msk [vmem:[#allocation2 + $0x70] sm:$0xff] %vm815, %v797
        %831 = vst.msk [vmem:[#allocation2 + $0x78] sm:$0xff] %vm815, %v798
        %832 = vst.msk [vmem:[#allocation2 + $0x80] sm:$0xff] %vm815, %v799
        %833 = vst.msk [vmem:[#allocation2 + $0x88] sm:$0xff] %vm815, %v800
        %834 = vst.msk [vmem:[#allocation2 + $0x90] sm:$0xff] %vm815, %v801
        %835 = vst.msk [vmem:[#allocation2 + $0x98] sm:$0xff] %vm815, %v802
        %836 = vst.msk [vmem:[#allocation2 + $0xa0] sm:$0xff] %vm815, %v803
        %837 = vst.msk [vmem:[#allocation2 + $0xa8] sm:$0xff] %vm815, %v804
        %838 = vst.msk [vmem:[#allocation2 + $0xb0] sm:$0xff] %vm815, %v805
        %839 = vst.msk [vmem:[#allocation2 + $0xb8] sm:$0xff] %vm815, %v806
        %840 = vst.msk [vmem:[#allocation2 + $0xc0] sm:$0xff] %vm815, %v807
        %841 = vst.msk [vmem:[#allocation2 + $0xc8] sm:$0xff] %vm815, %v808
        %842 = vst.msk [vmem:[#allocation2 + $0xd0] sm:$0xff] %vm815, %v809
        %843 = vst.msk [vmem:[#allocation2 + $0xd8] sm:$0xff] %vm815, %v810
        %844 = vst.msk [vmem:[#allocation2 + $0xe0] sm:$0xff] %vm815, %v811
        %845 = vst.msk [vmem:[#allocation2 + $0xe8] sm:$0xff] %vm815, %v812
        %846 = vst.msk [vmem:[#allocation2 + $0xf0] sm:$0xff] %vm815, %v813
        %847 = vst.msk [vmem:[#allocation2 + $0xf8] sm:$0xff] %vm815, %v814
        // Predicated region
        $region37: #{tpu_custom_call.1} parent=27 // pred_check
          %p848 = pneg %p233
        $region38: #{tpu_custom_call.1} parent=27 // pred_check_branch
          %850 = sbr.rel (%p848) target = $region40
        $region39: #{tpu_custom_call.1} parent=27 // pred_region
          %v851 = vld [vmem:[#allocation2] sm:$0xff]
          %v852 = vld [vmem:[#allocation2 + $0x8] sm:$0xff]
          %v853 = vld [vmem:[#allocation2 + $0x10] sm:$0xff]
          %v854 = vld [vmem:[#allocation2 + $0x18] sm:$0xff]
          %v855 = vld [vmem:[#allocation2 + $0x20] sm:$0xff]
          %v856 = vld [vmem:[#allocation2 + $0x28] sm:$0xff]
          %v857 = vld [vmem:[#allocation2 + $0x30] sm:$0xff]
          %v858 = vld [vmem:[#allocation2 + $0x38] sm:$0xff]
          %v859 = vld [vmem:[#allocation2 + $0x40] sm:$0xff]
          %v860 = vld [vmem:[#allocation2 + $0x48] sm:$0xff]
          %v861 = vld [vmem:[#allocation2 + $0x50] sm:$0xff]
          %v862 = vld [vmem:[#allocation2 + $0x58] sm:$0xff]
          %v863 = vld [vmem:[#allocation2 + $0x60] sm:$0xff]
          %v864 = vld [vmem:[#allocation2 + $0x68] sm:$0xff]
          %v865 = vld [vmem:[#allocation2 + $0x70] sm:$0xff]
          %v866 = vld [vmem:[#allocation2 + $0x78] sm:$0xff]
          %v867 = vld [vmem:[#allocation2 + $0x80] sm:$0xff]
          %v868 = vld [vmem:[#allocation2 + $0x88] sm:$0xff]
          %v869 = vld [vmem:[#allocation2 + $0x90] sm:$0xff]
          %v870 = vld [vmem:[#allocation2 + $0x98] sm:$0xff]
          %v871 = vld [vmem:[#allocation2 + $0xa0] sm:$0xff]
          %v872 = vld [vmem:[#allocation2 + $0xa8] sm:$0xff]
          %v873 = vld [vmem:[#allocation2 + $0xb0] sm:$0xff]
          %v874 = vld [vmem:[#allocation2 + $0xb8] sm:$0xff]
          %v875 = vld [vmem:[#allocation2 + $0xc0] sm:$0xff]
          %v876 = vld [vmem:[#allocation2 + $0xc8] sm:$0xff]
          %v877 = vld [vmem:[#allocation2 + $0xd0] sm:$0xff]
          %v878 = vld [vmem:[#allocation2 + $0xd8] sm:$0xff]
          %v879 = vld [vmem:[#allocation2 + $0xe0] sm:$0xff]
          %v880 = vld [vmem:[#allocation2 + $0xe8] sm:$0xff]
          %v881 = vld [vmem:[#allocation2 + $0xf0] sm:$0xff]
          %v882 = vld [vmem:[#allocation2 + $0xf8] sm:$0xff]
          %v883 = vpack.c.bf16 %v852, %v851
          %v884 = vpack.c.bf16 %v854, %v853
          %v885 = vpack.c.bf16 %v856, %v855
          %v886 = vpack.c.bf16 %v858, %v857
          %v887 = vpack.c.bf16 %v860, %v859
          %v888 = vpack.c.bf16 %v862, %v861
          %v889 = vpack.c.bf16 %v864, %v863
          %v890 = vpack.c.bf16 %v866, %v865
          %v891 = vpack.c.bf16 %v868, %v867
          %v892 = vpack.c.bf16 %v870, %v869
          %v893 = vpack.c.bf16 %v872, %v871
          %v894 = vpack.c.bf16 %v874, %v873
          %v895 = vpack.c.bf16 %v876, %v875
          %v896 = vpack.c.bf16 %v878, %v877
          %v897 = vpack.c.bf16 %v880, %v879
          %v898 = vpack.c.bf16 %v882, %v881
          %v915 = vunpack.c.l.b16 %v883
          %v916 = vunpack.c.h.b16 %v883
          %v917 = vunpack.c.l.b16 %v884
          %v918 = vunpack.c.h.b16 %v884
          %v919 = vunpack.c.l.b16 %v885
          %v920 = vunpack.c.h.b16 %v885
          %v921 = vunpack.c.l.b16 %v886
          %v922 = vunpack.c.h.b16 %v886
          %v923 = vunpack.c.l.b16 %v887
          %v924 = vunpack.c.h.b16 %v887
          %v925 = vunpack.c.l.b16 %v888
          %v926 = vunpack.c.h.b16 %v888
          %v927 = vunpack.c.l.b16 %v889
          %v928 = vunpack.c.h.b16 %v889
          %v929 = vunpack.c.l.b16 %v890
          %v930 = vunpack.c.h.b16 %v890
          %v931 = vunpack.c.l.b16 %v891
          %v932 = vunpack.c.h.b16 %v891
          %v933 = vunpack.c.l.b16 %v892
          %v934 = vunpack.c.h.b16 %v892
          %v935 = vunpack.c.l.b16 %v893
          %v936 = vunpack.c.h.b16 %v893
          %v937 = vunpack.c.l.b16 %v894
          %v938 = vunpack.c.h.b16 %v894
          %v939 = vunpack.c.l.b16 %v895
          %v940 = vunpack.c.h.b16 %v895
          %v941 = vunpack.c.l.b16 %v896
          %v942 = vunpack.c.h.b16 %v896
          %v943 = vunpack.c.l.b16 %v897
          %v944 = vunpack.c.h.b16 %v897
          %v945 = vunpack.c.l.b16 %v898
          %v946 = vunpack.c.h.b16 %v898
          %v947 = vpack.c.b16 %v915, %v915
          %v948 = vpack.c.b16 %v916, %v916
          %v949 = vpack.c.b16 %v917, %v917
          %v950 = vpack.c.b16 %v918, %v918
          %v951 = vpack.c.b16 %v919, %v919
          %v952 = vpack.c.b16 %v920, %v920
          %v953 = vpack.c.b16 %v921, %v921
          %v954 = vpack.c.b16 %v922, %v922
          %v955 = vpack.c.b16 %v923, %v923
          %v956 = vpack.c.b16 %v924, %v924
          %v957 = vpack.c.b16 %v925, %v925
          %v958 = vpack.c.b16 %v926, %v926
          %v959 = vpack.c.b16 %v927, %v927
          %v960 = vpack.c.b16 %v928, %v928
          %v961 = vpack.c.b16 %v929, %v929
          %v962 = vpack.c.b16 %v930, %v930
          %v963 = vpack.c.b16 %v931, %v931
          %v964 = vpack.c.b16 %v932, %v932
          %v965 = vpack.c.b16 %v933, %v933
          %v966 = vpack.c.b16 %v934, %v934
          %v967 = vpack.c.b16 %v935, %v935
          %v968 = vpack.c.b16 %v936, %v936
          %v969 = vpack.c.b16 %v937, %v937
          %v970 = vpack.c.b16 %v938, %v938
          %v971 = vpack.c.b16 %v939, %v939
          %v972 = vpack.c.b16 %v940, %v940
          %v973 = vpack.c.b16 %v941, %v941
          %v974 = vpack.c.b16 %v942, %v942
          %v975 = vpack.c.b16 %v943, %v943
          %v976 = vpack.c.b16 %v944, %v944
          %v977 = vpack.c.b16 %v945, %v945
          %v978 = vpack.c.b16 %v946, %v946
          %vm1011 = vcmask 519168
          %1012 = vst.msk [vmem:[%s230] sm:$0xf] %vm1011, %v947
          %1013 = vst.msk [vmem:[%s230 + $0x4] sm:$0xf] %vm1011, %v948
          %1014 = vst.msk [vmem:[%s230 + $0x8] sm:$0xf] %vm1011, %v949
          %1015 = vst.msk [vmem:[%s230 + $0xc] sm:$0xf] %vm1011, %v950
          %1016 = vst.msk [vmem:[%s230 + $0x10] sm:$0xf] %vm1011, %v951
          %1017 = vst.msk [vmem:[%s230 + $0x14] sm:$0xf] %vm1011, %v952
          %1018 = vst.msk [vmem:[%s230 + $0x18] sm:$0xf] %vm1011, %v953
          %1019 = vst.msk [vmem:[%s230 + $0x1c] sm:$0xf] %vm1011, %v954
          %1020 = vst.msk [vmem:[%s230 + $0x20] sm:$0xf] %vm1011, %v955
          %1021 = vst.msk [vmem:[%s230 + $0x24] sm:$0xf] %vm1011, %v956
          %1022 = vst.msk [vmem:[%s230 + $0x28] sm:$0xf] %vm1011, %v957
          %1023 = vst.msk [vmem:[%s230 + $0x2c] sm:$0xf] %vm1011, %v958
          %1024 = vst.msk [vmem:[%s230 + $0x30] sm:$0xf] %vm1011, %v959
          %1025 = vst.msk [vmem:[%s230 + $0x34] sm:$0xf] %vm1011, %v960
          %1026 = vst.msk [vmem:[%s230 + $0x38] sm:$0xf] %vm1011, %v961
          %1027 = vst.msk [vmem:[%s230 + $0x3c] sm:$0xf] %vm1011, %v962
          %1028 = vst.msk [vmem:[%s230 + $0x40] sm:$0xf] %vm1011, %v963
          %1029 = vst.msk [vmem:[%s230 + $0x44] sm:$0xf] %vm1011, %v964
          %1030 = vst.msk [vmem:[%s230 + $0x48] sm:$0xf] %vm1011, %v965
          %1031 = vst.msk [vmem:[%s230 + $0x4c] sm:$0xf] %vm1011, %v966
          %1032 = vst.msk [vmem:[%s230 + $0x50] sm:$0xf] %vm1011, %v967
          %1033 = vst.msk [vmem:[%s230 + $0x54] sm:$0xf] %vm1011, %v968
          %1034 = vst.msk [vmem:[%s230 + $0x58] sm:$0xf] %vm1011, %v969
          %1035 = vst.msk [vmem:[%s230 + $0x5c] sm:$0xf] %vm1011, %v970
          %1036 = vst.msk [vmem:[%s230 + $0x60] sm:$0xf] %vm1011, %v971
          %1037 = vst.msk [vmem:[%s230 + $0x64] sm:$0xf] %vm1011, %v972
          %1038 = vst.msk [vmem:[%s230 + $0x68] sm:$0xf] %vm1011, %v973
          %1039 = vst.msk [vmem:[%s230 + $0x6c] sm:$0xf] %vm1011, %v974
          %1040 = vst.msk [vmem:[%s230 + $0x70] sm:$0xf] %vm1011, %v975
          %1041 = vst.msk [vmem:[%s230 + $0x74] sm:$0xf] %vm1011, %v976
          %1042 = vst.msk [vmem:[%s230 + $0x78] sm:$0xf] %vm1011, %v977
          %1043 = vst.msk [vmem:[%s230 + $0x7c] sm:$0xf] %vm1011, %v978
        $region40: #{tpu_custom_call.1} parent=27 // pred_fallthru
          _
        %s1044 = smul.u32 32, %s21
        %p1045 = scmp.lt.s32.totalorder %s1044, 255
        %s1046 = scalar_select %p1045, %s1044, 255
        %p1047 = scmp.lt.s32.totalorder %s22, 0
        %s1048 = scalar_select %p1047, %s22, 0
        %s1049 = sadd.s32 %s1048, %s1046
        %s1050 = smul.addr %s1049, 4
        %s1051 = scalar_lea.vmem %s2, %s1050
        // Predicated region
        $region41: #{tpu_custom_call.1} parent=27 // pred_check
          %p1052 = pneg %p111
        $region42: #{tpu_custom_call.1} parent=27 // pred_check_branch
          %1054 = sbr.rel (%p1052) target = $region44
        $region43: #{tpu_custom_call.1} parent=27 // pred_region
          %s1055 = smul.u32 32, %s21
        $region44: #{tpu_custom_call.1} parent=27 // pred_fallthru
          _
      $region28: #{tpu_custom_call.1} parent=5 // pred_fallthru
        _
      %p1056 = scmp.le.s32.totalorder 2, %s11
      // Predicated region
      $region45: #{tpu_custom_call.1} parent=5 // pred_check
        %p1057 = pneg %p1056
      $region46: #{tpu_custom_call.1} parent=5 // pred_check_branch
        %1059 = sbr.rel (%p1057) target = $region48
      $region47: #{tpu_custom_call.1} parent=5 // pred_region
        %s1060 = ssub.s32 %s11, 2
        // Predicated region
        $region49: #{tpu_custom_call.1} parent=47 // pred_check
          %p1061 = pneg %p117
        $region50: #{tpu_custom_call.1} parent=47 // pred_check_branch
          %1063 = sbr.rel (%p1061) target = $region52
        $region51: #{tpu_custom_call.1} parent=47 // pred_region
          %s1064 = smul.u32 32, %s24
          %p1065 = scmp.lt.s32.totalorder %s1064, 255
          %s1066 = scalar_select %p1065, %s1064, 255
          %p1067 = scmp.lt.s32.totalorder %s25, 0
          %s1068 = scalar_select %p1067, %s25, 0
          %s1069 = sadd.s32 %s1068, %s1066
          %s1070 = smul.addr %s1069, 4
          %s1071 = scalar_lea.vmem %s2, %s1070
        $region52: #{tpu_custom_call.1} parent=47 // pred_fallthru
          _
      $region48: #{tpu_custom_call.1} parent=5 // pred_fallthru
        _
    $region6: #{tpu_custom_call.1} parent=1 // loop_footer
      %s15 = sadd.s32 1, %s11
    $region7: #{tpu_custom_call.1} parent=1 // loop_footer_branch
      %10 = sbr.rel target = $region3
    $region8: #{tpu_custom_call.1} parent=1 // loop_exit
      _
    %1072 = vsyncpa [#allocation4], 1
    %s1073 = scalar_lea.sflag [#allocation4], 1
    %1074 = vsyncpa %s1073, 1

</llo_original>
